<compile_context>
chip_gen: v5e
topology: v5e:2x2
jax: 0.10.0
libtpu: 0.0.40
codegen_flags: <defaults>
</compile_context>

<pallas_src>
import numpy as np

import jax
import jax.numpy as jnp
from jax.experimental import pallas as pl
from jax.experimental.pallas import tpu as pltpu


def soft_comp(x, t, w_lin, b_lin, bias, *, output_size, kernel_size, stride,
              padding, block_frames=None):
    """x: (b, n, hidden); w_lin: (c_out, hidden); b_lin: (c_out,); bias: (C, H, W)."""
    b, n, hidden = x.shape
    c_out = w_lin.shape[0]
    kh, kw = kernel_size
    sh, sw = stride
    ph, pw = padding
    H, W = output_size
    K = kh * kw
    C = c_out // K
    P = H * W
    Lh = (H + 2 * ph - kh) // sh + 1
    Lw = (W + 2 * pw - kw) // sw + 1
    L = Lh * Lw
    assert n % t == 0 and n // t == L, "n must equal t * (#fold windows)"
    BT = b * t
    out_dtype = x.dtype

    # Frames per grid step: as many as possible while keeping the grid length
    # even (v7x dual-TC sharding); falls back to 1 frame/step.
    F = block_frames
    if F is None:
        F = 1
        for cand in (8, 4, 2):
            if BT % cand == 0 and (BT // cand) % 2 == 0:
                F = cand
                break
    assert BT % F == 0
    grid_len = BT // F

    # ---------------- one-time host-side preparation ----------------
    # Fold scatter matrix: S[k, l, p] = 1 iff window l, kernel offset k writes
    # output pixel p (after cropping the padding). Matches torch.nn.Fold order.
    s_np = np.zeros((K, L, P), np.float32)
    for lh in range(Lh):
        for lw in range(Lw):
            l = lh * Lw + lw
            for ki in range(kh):
                for kj in range(kw):
                    y = lh * sh + ki - ph
                    xx = lw * sw + kj - pw
                    if 0 <= y < H and 0 <= xx < W:
                        s_np[ki * kw + kj, l, y * W + xx] = 1.0
    # Stacked (K*L, P) for the single long-reduction fold GEMM; 0/1 so bf16 exact.
    s_flat = jnp.asarray(s_np.reshape(K * L, P), dtype=jnp.bfloat16)

    # Linear weight rows are indexed c*K + k (torch order) -> pre-permute to
    # kernel-offset-major rows (K*C, hidden) for a single fused Linear GEMM.
    w_kc = jnp.transpose(w_lin.reshape(C, K, hidden), (1, 0, 2)).reshape(K * C, hidden)
    w_kc = w_kc.astype(jnp.bfloat16)

    # Fold(linear bias) + module bias combined into one (C, P) f32 slab,
    # tiled over the F frames of each block.
    cnt = jnp.asarray(s_np.sum(axis=1))                                  # (K, P)
    bias_comb = (b_lin.reshape(C, K).astype(jnp.float32) @ cnt
                 + bias.reshape(C, P).astype(jnp.float32))               # (C, P)
    bias_tiled = jnp.tile(bias_comb, (F, 1))                             # (F*C, P)

    # x: (b, n, hidden) -> (BT, hidden, L), bf16 GEMM operand (transposed once).
    x_t = jnp.transpose(x.reshape(BT, L, hidden), (0, 2, 1)).astype(jnp.bfloat16)

    def kernel(x_ref, w_ref, s_ref, bias_ref, out_ref):
        # x_ref:    (F, hidden, L) bf16 -- F frames of x^T
        # w_ref:    (K*C, hidden)  bf16 -- kernel-offset-major Linear weight
        # s_ref:    (K*L, P)       bf16 -- stacked fold scatter matrix
        # bias_ref: (F*C, P)       f32  -- combined additive bias
        # out_ref:  (F*C, P)
        w = w_ref[...]
        frame_rows = []
        for f in range(F):                                   # static unroll
            # Fused Linear: all K*C output channels in one GEMM (M = K*C).
            ff = jnp.dot(w, x_ref[f], preferred_element_type=jnp.float32)  # (K*C, L)
            # Relayout (K*C, L) -> (C, K*L): one bulk slice+concat per frame
            # so the fold below is a single long-reduction GEMM (not 16 M=4 dots).
            ck = jnp.concatenate([ff[k * C:(k + 1) * C, :] for k in range(K)],
                                 axis=1)                     # (C, K*L)
            frame_rows.append(ck.astype(jnp.bfloat16))
        feat = frame_rows[0] if F == 1 else jnp.concatenate(frame_rows, axis=0)  # (F*C, K*L)
        # Fold as a single GEMM: reduction K*L, lane-dense output (F*C, P).
        acc = jnp.dot(feat, s_ref[...], preferred_element_type=jnp.float32)      # (F*C, P)
        out_ref[...] = (acc + bias_ref[...]).astype(out_ref.dtype)

    flops = 2 * BT * (K * C * hidden * L + C * K * L * P)
    bytes_accessed = (x_t.size * 2 + w_kc.size * 2 + s_flat.size * 2
                      + bias_tiled.size * 4
                      + BT * C * P * np.dtype(out_dtype).itemsize)

    out = pl.pallas_call(
        kernel,
        out_shape=jax.ShapeDtypeStruct((BT * C, P), out_dtype),
        grid_spec=pltpu.PrefetchScalarGridSpec(
            num_scalar_prefetch=0,
            grid=(grid_len,),
            in_specs=[
                pl.BlockSpec((F, hidden, L), lambda i: (i, 0, 0)),   # F frames / step
                pl.BlockSpec((K * C, hidden), lambda i: (0, 0)),     # resident weight
                pl.BlockSpec((K * L, P), lambda i: (0, 0)),          # resident scatter mat
                pl.BlockSpec((F * C, P), lambda i: (0, 0)),          # resident bias slab
            ],
            out_specs=pl.BlockSpec((F * C, P), lambda i: (i, 0)),
        ),
        compiler_params=pltpu.CompilerParams(
            dimension_semantics=("parallel",),
        ),
        cost_estimate=pl.CostEstimate(flops=int(flops), transcendentals=0,
                                      bytes_accessed=int(bytes_accessed)),
    )(x_t, w_kc, s_flat, bias_tiled)

    return out.reshape(BT, C, H, W)


def _reference(x, t, w_lin, b_lin, bias, *, output_size, kernel_size, stride, padding):
    """Independent pure-JAX SoftComp forward (explicit fold via overlap-add)."""
    b, n, hidden = x.shape
    c_out = w_lin.shape[0]
    kh, kw = kernel_size
    sh, sw = stride
    ph, pw = padding
    H, W = output_size
    K = kh * kw
    C = c_out // K
    Lh = (H + 2 * ph - kh) // sh + 1
    Lw = (W + 2 * pw - kw) // sw + 1
    L = Lh * Lw
    BT = b * t

    feat = x @ w_lin.T + b_lin                                   # (b, n, c_out)
    cols = feat.reshape(BT, L, C, kh, kw)                        # torch Fold channel order
    out_p = jnp.zeros((BT, C, H + 2 * ph, W + 2 * pw), jnp.float32)
    for lh in range(Lh):
        for lw in range(Lw):
            l = lh * Lw + lw
            out_p = out_p.at[:, :, lh * sh:lh * sh + kh, lw * sw:lw * sw + kw].add(cols[:, l])
    return out_p[:, :, ph:ph + H, pw:pw + W] + bias[None]


if __name__ == "__main__":
    key = jax.random.PRNGKey(0)
    k1, k2, k3, k4 = jax.random.split(key, 4)

    # Small SoftComp config: channel=4, hidden=32, output 16x16, kernel 4x4,
    # stride 2x2, padding 1x1  ->  L = 8*8 = 64 windows per frame, b=2, t=2.
    channel, hidden = 4, 32
    output_size = (16, 16)
    kernel_size = (4, 4)
    stride = (2, 2)
    padding = (1, 1)
    b, t = 2, 2

    kh, kw = kernel_size
    sh, sw = stride
    ph, pw = padding
    H, W = output_size
    Lh = (H + 2 * ph - kh) // sh + 1
    Lw = (W + 2 * pw - kw) // sw + 1
    L = Lh * Lw
    n = t * L
    c_out = kh * kw * channel

    x = jax.random.normal(k1, (b, n, hidden), dtype=jnp.float32)
    w_lin = jax.random.normal(k2, (c_out, hidden), dtype=jnp.float32) * (1.0 / np.sqrt(hidden))
    b_lin = jax.random.normal(k3, (c_out,), dtype=jnp.float32) * 0.1
    bias = jax.random.normal(k4, (channel, H, W), dtype=jnp.float32) * 0.1

    out = soft_comp(x, t, w_lin, b_lin, bias, output_size=output_size,
                    kernel_size=kernel_size, stride=stride, padding=padding)
    jax.block_until_ready(out)

    # The kernel feeds the MXU bf16 operands (f32 accumulation), so compare
    # against the reference evaluated on bf16-rounded GEMM inputs; tolerance
    # covers the in-kernel bf16 rounding of the intermediate feat.
    x_q = x.astype(jnp.bfloat16).astype(jnp.float32)
    w_q = w_lin.astype(jnp.bfloat16).astype(jnp.float32)
    ref = _reference(x_q, t, w_q, b_lin, bias, output_size=output_size,
                     kernel_size=kernel_size, stride=stride, padding=padding)
    assert out.shape == ref.shape == (b * t, channel, H, W)
    err = float(jnp.max(jnp.abs(out - ref)))
    assert jnp.allclose(out, ref, atol=3e-2, rtol=3e-2), err

    print("KERNEL_OK")
</pallas_src>

<mosaic_0001>
module attributes {stable_mosaic.version = 11 : i64} {
  func.func @kernel(%arg0: i32, %arg1: memref<2x32x64xbf16, #tpu.memory_space<vmem>>, %arg2: memref<64x32xbf16, #tpu.memory_space<vmem>>, %arg3: memref<1024x256xbf16, #tpu.memory_space<vmem>>, %arg4: memref<8x256xf32, #tpu.memory_space<vmem>>, %arg5: memref<8x256xf32, #tpu.memory_space<vmem>>) attributes {dimension_semantics = [#tpu.dimension_semantics<parallel>], iteration_bounds = array<i64: 2>, scalar_prefetch = 0 : i64, scratch_operands = 0 : i64, tpu.core_type = #tpu.core_type<tc>, window_params = [{transform_indices = @transform_0, window_bounds = array<i64: 2, 32, 64>}, {pipeline_mode = #tpu.pipeline_mode<synchronous>, transform_indices = @transform_1, window_bounds = array<i64: 64, 32>}, {pipeline_mode = #tpu.pipeline_mode<synchronous>, transform_indices = @transform_2, window_bounds = array<i64: 1024, 256>}, {pipeline_mode = #tpu.pipeline_mode<synchronous>, transform_indices = @transform_3, window_bounds = array<i64: 8, 256>}, {transform_indices = @transform_4, window_bounds = array<i64: 8, 256>}]} {
    %c0 = arith.constant 0 : index
    %c0_0 = arith.constant 0 : index
    %0 = vector.load %arg2[%c0, %c0_0] : memref<64x32xbf16, #tpu.memory_space<vmem>>, vector<64x32xbf16>
    %c0_1 = arith.constant 0 : index
    %c0_2 = arith.constant 0 : index
    %c0_3 = arith.constant 0 : index
    %1 = vector.load %arg1[%c0_1, %c0_2, %c0_3] : memref<2x32x64xbf16, #tpu.memory_space<vmem>>, vector<1x32x64xbf16>
    %2 = vector.shape_cast %1 : vector<1x32x64xbf16> to vector<32x64xbf16>
    %cst = arith.constant dense<0.000000e+00> : vector<64x64xf32>
    %3 = tpu.matmul %0, %2, %cst {dimension_numbers = #tpu.dot_dimension_numbers<[1], [0], [0], [1], [0, 0, 1, 1], [], []>} : vector<64x32xbf16>, vector<32x64xbf16>, vector<64x64xf32> -> vector<64x64xf32>
    %4 = vector.extract_strided_slice %3 {offsets = [0, 0], sizes = [4, 64], strides = [1, 1]} : vector<64x64xf32> to vector<4x64xf32>
    %5 = vector.extract_strided_slice %3 {offsets = [4, 0], sizes = [4, 64], strides = [1, 1]} : vector<64x64xf32> to vector<4x64xf32>
    %6 = vector.extract_strided_slice %3 {offsets = [8, 0], sizes = [4, 64], strides = [1, 1]} : vector<64x64xf32> to vector<4x64xf32>
    %7 = vector.extract_strided_slice %3 {offsets = [12, 0], sizes = [4, 64], strides = [1, 1]} : vector<64x64xf32> to vector<4x64xf32>
    %8 = vector.extract_strided_slice %3 {offsets = [16, 0], sizes = [4, 64], strides = [1, 1]} : vector<64x64xf32> to vector<4x64xf32>
    %9 = vector.extract_strided_slice %3 {offsets = [20, 0], sizes = [4, 64], strides = [1, 1]} : vector<64x64xf32> to vector<4x64xf32>
    %10 = vector.extract_strided_slice %3 {offsets = [24, 0], sizes = [4, 64], strides = [1, 1]} : vector<64x64xf32> to vector<4x64xf32>
    %11 = vector.extract_strided_slice %3 {offsets = [28, 0], sizes = [4, 64], strides = [1, 1]} : vector<64x64xf32> to vector<4x64xf32>
    %12 = vector.extract_strided_slice %3 {offsets = [32, 0], sizes = [4, 64], strides = [1, 1]} : vector<64x64xf32> to vector<4x64xf32>
    %13 = vector.extract_strided_slice %3 {offsets = [36, 0], sizes = [4, 64], strides = [1, 1]} : vector<64x64xf32> to vector<4x64xf32>
    %14 = vector.extract_strided_slice %3 {offsets = [40, 0], sizes = [4, 64], strides = [1, 1]} : vector<64x64xf32> to vector<4x64xf32>
    %15 = vector.extract_strided_slice %3 {offsets = [44, 0], sizes = [4, 64], strides = [1, 1]} : vector<64x64xf32> to vector<4x64xf32>
    %16 = vector.extract_strided_slice %3 {offsets = [48, 0], sizes = [4, 64], strides = [1, 1]} : vector<64x64xf32> to vector<4x64xf32>
    %17 = vector.extract_strided_slice %3 {offsets = [52, 0], sizes = [4, 64], strides = [1, 1]} : vector<64x64xf32> to vector<4x64xf32>
    %18 = vector.extract_strided_slice %3 {offsets = [56, 0], sizes = [4, 64], strides = [1, 1]} : vector<64x64xf32> to vector<4x64xf32>
    %19 = vector.extract_strided_slice %3 {offsets = [60, 0], sizes = [4, 64], strides = [1, 1]} : vector<64x64xf32> to vector<4x64xf32>
    %20 = tpu.concatenate %4, %5, %6, %7, %8, %9, %10, %11, %12, %13, %14, %15, %16, %17, %18, %19 in 1 : vector<4x64xf32>, vector<4x64xf32>, vector<4x64xf32>, vector<4x64xf32>, vector<4x64xf32>, vector<4x64xf32>, vector<4x64xf32>, vector<4x64xf32>, vector<4x64xf32>, vector<4x64xf32>, vector<4x64xf32>, vector<4x64xf32>, vector<4x64xf32>, vector<4x64xf32>, vector<4x64xf32>, vector<4x64xf32> -> vector<4x1024xf32>
    %21 = arith.truncf %20 : vector<4x1024xf32> to vector<4x1024xbf16>
    %c1 = arith.constant 1 : index
    %c0_4 = arith.constant 0 : index
    %c0_5 = arith.constant 0 : index
    %22 = vector.load %arg1[%c1, %c0_4, %c0_5] : memref<2x32x64xbf16, #tpu.memory_space<vmem>>, vector<1x32x64xbf16>
    %23 = vector.shape_cast %22 : vector<1x32x64xbf16> to vector<32x64xbf16>
    %cst_6 = arith.constant dense<0.000000e+00> : vector<64x64xf32>
    %24 = tpu.matmul %0, %23, %cst_6 {dimension_numbers = #tpu.dot_dimension_numbers<[1], [0], [0], [1], [0, 0, 1, 1], [], []>} : vector<64x32xbf16>, vector<32x64xbf16>, vector<64x64xf32> -> vector<64x64xf32>
    %25 = vector.extract_strided_slice %24 {offsets = [0, 0], sizes = [4, 64], strides = [1, 1]} : vector<64x64xf32> to vector<4x64xf32>
    %26 = vector.extract_strided_slice %24 {offsets = [4, 0], sizes = [4, 64], strides = [1, 1]} : vector<64x64xf32> to vector<4x64xf32>
    %27 = vector.extract_strided_slice %24 {offsets = [8, 0], sizes = [4, 64], strides = [1, 1]} : vector<64x64xf32> to vector<4x64xf32>
    %28 = vector.extract_strided_slice %24 {offsets = [12, 0], sizes = [4, 64], strides = [1, 1]} : vector<64x64xf32> to vector<4x64xf32>
    %29 = vector.extract_strided_slice %24 {offsets = [16, 0], sizes = [4, 64], strides = [1, 1]} : vector<64x64xf32> to vector<4x64xf32>
    %30 = vector.extract_strided_slice %24 {offsets = [20, 0], sizes = [4, 64], strides = [1, 1]} : vector<64x64xf32> to vector<4x64xf32>
    %31 = vector.extract_strided_slice %24 {offsets = [24, 0], sizes = [4, 64], strides = [1, 1]} : vector<64x64xf32> to vector<4x64xf32>
    %32 = vector.extract_strided_slice %24 {offsets = [28, 0], sizes = [4, 64], strides = [1, 1]} : vector<64x64xf32> to vector<4x64xf32>
    %33 = vector.extract_strided_slice %24 {offsets = [32, 0], sizes = [4, 64], strides = [1, 1]} : vector<64x64xf32> to vector<4x64xf32>
    %34 = vector.extract_strided_slice %24 {offsets = [36, 0], sizes = [4, 64], strides = [1, 1]} : vector<64x64xf32> to vector<4x64xf32>
    %35 = vector.extract_strided_slice %24 {offsets = [40, 0], sizes = [4, 64], strides = [1, 1]} : vector<64x64xf32> to vector<4x64xf32>
    %36 = vector.extract_strided_slice %24 {offsets = [44, 0], sizes = [4, 64], strides = [1, 1]} : vector<64x64xf32> to vector<4x64xf32>
    %37 = vector.extract_strided_slice %24 {offsets = [48, 0], sizes = [4, 64], strides = [1, 1]} : vector<64x64xf32> to vector<4x64xf32>
    %38 = vector.extract_strided_slice %24 {offsets = [52, 0], sizes = [4, 64], strides = [1, 1]} : vector<64x64xf32> to vector<4x64xf32>
    %39 = vector.extract_strided_slice %24 {offsets = [56, 0], sizes = [4, 64], strides = [1, 1]} : vector<64x64xf32> to vector<4x64xf32>
    %40 = vector.extract_strided_slice %24 {offsets = [60, 0], sizes = [4, 64], strides = [1, 1]} : vector<64x64xf32> to vector<4x64xf32>
    %41 = tpu.concatenate %25, %26, %27, %28, %29, %30, %31, %32, %33, %34, %35, %36, %37, %38, %39, %40 in 1 : vector<4x64xf32>, vector<4x64xf32>, vector<4x64xf32>, vector<4x64xf32>, vector<4x64xf32>, vector<4x64xf32>, vector<4x64xf32>, vector<4x64xf32>, vector<4x64xf32>, vector<4x64xf32>, vector<4x64xf32>, vector<4x64xf32>, vector<4x64xf32>, vector<4x64xf32>, vector<4x64xf32>, vector<4x64xf32> -> vector<4x1024xf32>
    %42 = arith.truncf %41 : vector<4x1024xf32> to vector<4x1024xbf16>
    %43 = tpu.concatenate %21, %42 in 0 : vector<4x1024xbf16>, vector<4x1024xbf16> -> vector<8x1024xbf16>
    %c0_7 = arith.constant 0 : index
    %c0_8 = arith.constant 0 : index
    %44 = vector.load %arg3[%c0_7, %c0_8] : memref<1024x256xbf16, #tpu.memory_space<vmem>>, vector<1024x256xbf16>
    %cst_9 = arith.constant dense<0.000000e+00> : vector<8x256xf32>
    %45 = tpu.matmul %43, %44, %cst_9 {dimension_numbers = #tpu.dot_dimension_numbers<[1], [0], [0], [1], [0, 0, 1, 1], [], []>} : vector<8x1024xbf16>, vector<1024x256xbf16>, vector<8x256xf32> -> vector<8x256xf32>
    %c0_10 = arith.constant 0 : index
    %c0_11 = arith.constant 0 : index
    %46 = vector.load %arg4[%c0_10, %c0_11] : memref<8x256xf32, #tpu.memory_space<vmem>>, vector<8x256xf32>
    %47 = arith.addf %45, %46 : vector<8x256xf32>
    %c0_12 = arith.constant 0 : index
    %c0_13 = arith.constant 0 : index
    %48 = vector.load %arg5[%c0_12, %c0_13] : memref<8x256xf32, #tpu.memory_space<vmem>>, vector<8x256xf32>
    tpu.vector_store %arg5[%c0_12, %c0_13], %47 {strides = array<i32>} : memref<8x256xf32, #tpu.memory_space<vmem>>, vector<8x256xf32>,
    return
  }
  func.func @transform_0(%arg0: i32) -> (i32, i32, i32) {
    %c0_i32 = arith.constant 0 : i32
    %c0_i32_0 = arith.constant 0 : i32
    %c0_i32_1 = arith.constant 0 : i32
    return %arg0, %c0_i32, %c0_i32_0 : i32, i32, i32
  }
  func.func @transform_1(%arg0: i32) -> (i32, i32) {
    %c0_i32 = arith.constant 0 : i32
    %c0_i32_0 = arith.constant 0 : i32
    %c0_i32_1 = arith.constant 0 : i32
    return %c0_i32, %c0_i32_0 : i32, i32
  }
  func.func @transform_2(%arg0: i32) -> (i32, i32) {
    %c0_i32 = arith.constant 0 : i32
    %c0_i32_0 = arith.constant 0 : i32
    %c0_i32_1 = arith.constant 0 : i32
    return %c0_i32, %c0_i32_0 : i32, i32
  }
  func.func @transform_3(%arg0: i32) -> (i32, i32) {
    %c0_i32 = arith.constant 0 : i32
    %c0_i32_0 = arith.constant 0 : i32
    %c0_i32_1 = arith.constant 0 : i32
    return %c0_i32, %c0_i32_0 : i32, i32
  }
  func.func @transform_4(%arg0: i32) -> (i32, i32) {
    %c0_i32 = arith.constant 0 : i32
    %c0_i32_0 = arith.constant 0 : i32
    return %arg0, %c0_i32 : i32, i32
  }
}

</mosaic_0001>

<llo_original>
// kernel: tpu_custom_call.1
$region0: #{tpu_custom_call.1}
  #allocation0 [shape = 'u32[]', space=smem, size = 0x4, offset = 0x4, fixed_abs, tag = 'smem constant byte address 0x4 - core index']
  #allocation1 [shape = 'u32[72,128]{1,0:T(1,128)}', space=vmem, size = 0x9000, scoped, tag = 'internal scratch']
  %s0 = inlined_call_operand.hbm [shape: bf16[4,32,64], index: 0, kind: input, shape index: {}]
  %s1 = inlined_call_operand.vmem [shape: bf16[64,32], index: 1, kind: input, shape index: {}]
  %s2 = inlined_call_operand.hbm [shape: bf16[1024,256], index: 2, kind: input, shape index: {}]
  %s3 = inlined_call_operand.vmem [shape: f32[8,256], index: 3, kind: input, shape index: {}]
  %s4 = inlined_call_operand.hbm [shape: f32[16,256], index: 4, kind: output, shape index: {}]
  %s5 = sld [smem:[#allocation0]]
  $region57: #{tpu_custom_call.1} parent=0
    _
  %s7 = ssub.s32 1, %s5
  %s8 = scalar_select 0, %s7, %s5
  $region1: #{tpu_custom_call.1} parent=0
    #allocation2 [shape = 'u8[32768]{0}', space=vmem, size = 0x8000, scoped, tag = 'input window, operand 0']
    #allocation3 [shape = 's32[2]{0}', space=sflag, size = 0x8, scoped, tag = 'scoped memory for tpu_custom_call.1']
    #allocation4 [shape = 's32[2]{0}', space=sflag, size = 0x8, scoped, tag = 'scoped memory for tpu_custom_call.1']
    #allocation5 [shape = 'u8[524288]{0}', space=vmem, size = 0x80000, scoped, tag = 'input window, operand 2, single buffered']
    #allocation6 [shape = 's32[1]{0}', space=sflag, size = 0x4, scoped, tag = 'scoped memory for tpu_custom_call.1']
    #allocation7 [shape = 'u8[16384]{0}', space=vmem, size = 0x4000, scoped, tag = 'output window, operand 0']
    %9 = vsyncpa [#allocation3], 0
    %s10 = scalar_lea.sflag [#allocation3], 1
    %11 = vsyncpa %s10, 0
    %12 = vsyncpa [#allocation6], 0
    %13 = vsyncpa [#allocation4], 0
    %s14 = scalar_lea.sflag [#allocation4], 1
    %15 = vsyncpa %s14, 0
    loop: start=0, step=1, limit=4
    $region2: #{tpu_custom_call.1} parent=1 // loop_pre_header
      _
    $region3: #{tpu_custom_call.1} parent=1 // loop_header
      %s17 = sphi 0, %s21
      %p18 = scmp.ge.s32.totalorder %s17, 4
      %s27 = sphi 0, %s29
      %s30 = sphi 0, %s27
      %s31 = sphi 0, %s30
      %s47 = sphi 0, %s31
      %s51 = sphi 0, %s51
      %s53 = sphi 0, %s51
      %s54 = sphi 0, %s53
      %s68 = sphi 0, %s54
      %s72 = sphi 0, %s72
      %s74 = sphi 0, %s72
      %s75 = sphi 0, %s74
      %s89 = sphi 0, %s75
      %s93 = sphi 0, %s93
      %s95 = sphi 0, %s93
      %s96 = sphi 0, %s95
      %s110 = sphi 0, %s96
      %s116 = sphi 0, %s118
      %s119 = sphi 0, %s116
      %s120 = sphi 0, %s119
      %s136 = sphi 0, %s120
    $region4: #{tpu_custom_call.1} parent=1 // loop_header_branch
      %20 = sbr.rel (%p18) target = $region8
    $region5: #{tpu_custom_call.1} parent=1 // loop_body
      %s22 = ssub.s32 %s17, 1
      %s23 = ssub.s32 %s17, 2
      %s24 = sadd.s32 %s17, 1
      %s25 = ssub.s32 %s17, %s24
      %p26 = scmp.eq.s32.totalorder %s25, 0
      %s28 = sadd.s32 %s27, 1
      %s29 = scalar_select %p26, %s27, %s28
      %p32 = pneg %p26
      %p33 = scmp.eq.s32.totalorder %s17, 1
      %p34 = por %p32, %p33
      %p35 = scmp.ne.s32.totalorder %s27, %s30
      %p36 = scmp.eq.s32.totalorder %s17, 0
      %p37 = por %p35, %p36
      %p38 = scmp.ne.s32.totalorder %s27, %s30
      %p39 = scmp.eq.s32.totalorder %s22, 1
      %p40 = por %p38, %p39
      %p41 = scmp.ne.s32.totalorder %s30, %s31
      %p42 = scmp.eq.s32.totalorder %s22, 0
      %p43 = por %p41, %p42
      %p44 = scmp.ne.s32.totalorder %s30, %s31
      %p45 = scmp.eq.s32.totalorder %s23, 1
      %p46 = por %p44, %p45
      %p48 = scmp.ne.s32.totalorder %s31, %s47
      %p49 = scmp.eq.s32.totalorder %s23, 0
      %p50 = por %p48, %p49
      %s52 = sadd.s32 %s51, 1
      %p55 = scmp.eq.s32.totalorder %s17, 1
      %p56 = scmp.ne.s32.totalorder %s51, %s53
      %p57 = scmp.eq.s32.totalorder %s17, 0
      %p58 = por %p56, %p57
      %p59 = scmp.ne.s32.totalorder %s51, %s53
      %p60 = scmp.eq.s32.totalorder %s22, 1
      %p61 = por %p59, %p60
      %p62 = scmp.ne.s32.totalorder %s53, %s54
      %p63 = scmp.eq.s32.totalorder %s22, 0
      %p64 = por %p62, %p63
      %p65 = scmp.ne.s32.totalorder %s53, %s54
      %p66 = scmp.eq.s32.totalorder %s23, 1
      %p67 = por %p65, %p66
      %p69 = scmp.ne.s32.totalorder %s54, %s68
      %p70 = scmp.eq.s32.totalorder %s23, 0
      %p71 = por %p69, %p70
      %s73 = sadd.s32 %s72, 1
      %p76 = scmp.eq.s32.totalorder %s17, 1
      %p77 = scmp.ne.s32.totalorder %s72, %s74
      %p78 = scmp.eq.s32.totalorder %s17, 0
      %p79 = por %p77, %p78
      %p80 = scmp.ne.s32.totalorder %s72, %s74
      %p81 = scmp.eq.s32.totalorder %s22, 1
      %p82 = por %p80, %p81
      %p83 = scmp.ne.s32.totalorder %s74, %s75
      %p84 = scmp.eq.s32.totalorder %s22, 0
      %p85 = por %p83, %p84
      %p86 = scmp.ne.s32.totalorder %s74, %s75
      %p87 = scmp.eq.s32.totalorder %s23, 1
      %p88 = por %p86, %p87
      %p90 = scmp.ne.s32.totalorder %s75, %s89
      %p91 = scmp.eq.s32.totalorder %s23, 0
      %p92 = por %p90, %p91
      %s94 = sadd.s32 %s93, 1
      %p97 = scmp.eq.s32.totalorder %s17, 1
      %p98 = scmp.ne.s32.totalorder %s93, %s95
      %p99 = scmp.eq.s32.totalorder %s17, 0
      %p100 = por %p98, %p99
      %p101 = scmp.ne.s32.totalorder %s93, %s95
      %p102 = scmp.eq.s32.totalorder %s22, 1
      %p103 = por %p101, %p102
      %p104 = scmp.ne.s32.totalorder %s95, %s96
      %p105 = scmp.eq.s32.totalorder %s22, 0
      %p106 = por %p104, %p105
      %p107 = scmp.ne.s32.totalorder %s95, %s96
      %p108 = scmp.eq.s32.totalorder %s23, 1
      %p109 = por %p107, %p108
      %p111 = scmp.ne.s32.totalorder %s96, %s110
      %p112 = scmp.eq.s32.totalorder %s23, 0
      %p113 = por %p111, %p112
      %s114 = ssub.s32 %s17, %s24
      %p115 = scmp.eq.s32.totalorder %s114, 0
      %s117 = sadd.s32 %s116, 1
      %s118 = scalar_select %p115, %s116, %s117
      %p121 = pneg %p115
      %p122 = scmp.eq.s32.totalorder %s17, 1
      %p123 = por %p121, %p122
      %p124 = scmp.ne.s32.totalorder %s116, %s119
      %p125 = scmp.eq.s32.totalorder %s17, 0
      %p126 = por %p124, %p125
      %p127 = scmp.ne.s32.totalorder %s116, %s119
      %p128 = scmp.eq.s32.totalorder %s22, 1
      %p129 = por %p127, %p128
      %p130 = scmp.ne.s32.totalorder %s119, %s120
      %p131 = scmp.eq.s32.totalorder %s22, 0
      %p132 = por %p130, %p131
      %p133 = scmp.ne.s32.totalorder %s119, %s120
      %p134 = scmp.eq.s32.totalorder %s23, 1
      %p135 = por %p133, %p134
      %p137 = scmp.ne.s32.totalorder %s120, %s136
      %p138 = scmp.eq.s32.totalorder %s23, 0
      %p139 = por %p137, %p138
      %p140 = scmp.le.s32.totalorder 1, %s17
      %p141 = scmp.lt.s32.totalorder %s17, 3
      %p142 = pnand %p140, %p141
      %p143 = pneg %p142
      // Predicated region
      $region9: #{tpu_custom_call.1} parent=5 // pred_check
        _
      $region10: #{tpu_custom_call.1} parent=5 // pred_check_branch
        %145 = sbr.rel (%p142) target = $region12
      $region11: #{tpu_custom_call.1} parent=5 // pred_region
        %s146 = ssub.s32 %s17, 1
        // Predicated region
        $region13: #{tpu_custom_call.1} parent=11 // pred_check
          %p147 = pneg %p64
        $region14: #{tpu_custom_call.1} parent=11 // pred_check_branch
          %149 = sbr.rel (%p147) target = $region16
        $region15: #{tpu_custom_call.1} parent=11 // pred_region
          _
        $region16: #{tpu_custom_call.1} parent=11 // pred_fallthru
          _
        // Predicated region
        $region17: #{tpu_custom_call.1} parent=11 // pred_check
          %p150 = pneg %p85
        $region18: #{tpu_custom_call.1} parent=11 // pred_check_branch
          %152 = sbr.rel (%p150) target = $region20
        $region19: #{tpu_custom_call.1} parent=11 // pred_region
          %154 = vsyncadd [#allocation6], 0
          %s155 = sshll.u32 %s2, 4
          %s156 = int_to_ptr.hbm [resolvable:$true] %s155
          %s157 = sshll.u32 [#allocation5], 4
          %s158 = int_to_ptr.vmem [resolvable:$true] %s157
          %163 = dma.hbm_to_vmem [thread:$0]  %s156, 16384, %s158, [#allocation6], 128, 128, 8
        $region20: #{tpu_custom_call.1} parent=11 // pred_fallthru
          _
        // Predicated region
        $region21: #{tpu_custom_call.1} parent=11 // pred_check
          %p164 = pneg %p106
        $region22: #{tpu_custom_call.1} parent=11 // pred_check_branch
          %166 = sbr.rel (%p164) target = $region24
        $region23: #{tpu_custom_call.1} parent=11 // pred_region
          _
        $region24: #{tpu_custom_call.1} parent=11 // pred_fallthru
          _
      $region12: #{tpu_custom_call.1} parent=5 // pred_fallthru
        _
      %p167 = scmp.lt.s32.totalorder %s17, 2
      // Predicated region
      $region25: #{tpu_custom_call.1} parent=5 // pred_check
        %p168 = pneg %p167
      $region26: #{tpu_custom_call.1} parent=5 // pred_check_branch
        %170 = sbr.rel (%p168) target = $region28
      $region27: #{tpu_custom_call.1} parent=5 // pred_region
        // Predicated region
        $region29: #{tpu_custom_call.1} parent=27 // pred_check
          %p171 = pneg %p37
        $region30: #{tpu_custom_call.1} parent=27 // pred_check_branch
          %173 = sbr.rel (%p171) target = $region32
        $region31: #{tpu_custom_call.1} parent=27 // pred_region
          %s174 = sand.u32 %s27, 1
          %s175 = scalar_lea.sflag [#allocation3], %s174
          %s176 = sand.u32 %s27, 1
          %s177 = smul.addr %s176, 32
          %s178 = scalar_lea.vmem [#allocation2], %s177
          %s179 = smul.u32 2, %s17
          %181 = vsyncadd %s175, 0
          %s182 = smul.addr %s179, 4
          %s183 = smul.addr %s182, 4
          %s184 = scalar_lea.hbm %s0, %s183
          %s185 = sshll.u32 %s184, 4
          %s186 = int_to_ptr.hbm [resolvable:$true] %s185
          %s187 = sshll.u32 %s178, 4
          %s188 = int_to_ptr.vmem [resolvable:$true] %s187
          %193 = dma.hbm_to_vmem [thread:$0]  %s186, 512, %s188, %s175, 64, 64, 4
        $region32: #{tpu_custom_call.1} parent=27 // pred_fallthru
          _
      $region28: #{tpu_custom_call.1} parent=5 // pred_fallthru
        _
      %p194 = scmp.le.s32.totalorder 1, %s17
      %p195 = scmp.lt.s32.totalorder %s17, 3
      %p196 = pnand %p194, %p195
      %p197 = pneg %p196
      // Predicated region
      $region33: #{tpu_custom_call.1} parent=5 // pred_check
        _
      $region34: #{tpu_custom_call.1} parent=5 // pred_check_branch
        %199 = sbr.rel (%p196) target = $region36
      $region35: #{tpu_custom_call.1} parent=5 // pred_region
        %s200 = ssub.s32 %s17, 1
        %s201 = sand.u32 %s30, 1
        %s202 = scalar_lea.sflag [#allocation3], %s201
        %s203 = sand.u32 %s30, 1
        %s204 = smul.addr %s203, 32
        %s205 = scalar_lea.vmem [#allocation2], %s204
        // Predicated region
        $region37: #{tpu_custom_call.1} parent=35 // pred_check
          %p206 = pneg %p43
        $region38: #{tpu_custom_call.1} parent=35 // pred_check_branch
          %208 = sbr.rel (%p206) target = $region40
        $region39: #{tpu_custom_call.1} parent=35 // pred_region
          %210 = dma.done %s202, 512
        $region40: #{tpu_custom_call.1} parent=35 // pred_fallthru
          _
        // Predicated region
        $region41: #{tpu_custom_call.1} parent=35 // pred_check
          %p211 = pneg %p85
        $region42: #{tpu_custom_call.1} parent=35 // pred_check_branch
          %213 = sbr.rel (%p211) target = $region44
        $region43: #{tpu_custom_call.1} parent=35 // pred_region
          %215 = dma.done [#allocation6], 16384
        $region44: #{tpu_custom_call.1} parent=35 // pred_fallthru
          _
        %s216 = sand.u32 %s30, 1
        %s217 = scalar_lea.sflag [#allocation3], %s216
        %s218 = sand.u32 %s30, 1
        %s219 = smul.addr %s218, 32
        %s220 = scalar_lea.vmem [#allocation2], %s219
        %p221 = pneg %p43
        %p222 = pneg %p40
        %p223 = pneg %p64
        %p224 = pneg %p61
        %p225 = pneg %p85
        %p226 = pneg %p82
        %p227 = pneg %p106
        %p228 = pneg %p103
        %p229 = pneg %p132
        %p230 = pneg %p129
        %s231 = sand.u32 %s119, 1
        %s232 = scalar_lea.sflag [#allocation4], %s231
        %s233 = sand.u32 %s119, 1
        %s234 = smul.addr %s233, 16
        %s235 = scalar_lea.vmem [#allocation7], %s234
        %s236 = smul.u32 2, %s22
        %v238 = vld [vmem:[%s1] sm:$0xf]
        %v239 = vld [vmem:[%s1 + $0x4] sm:$0xf]
        %v240 = vld [vmem:[%s1 + $0x8] sm:$0xf]
        %v241 = vld [vmem:[%s1 + $0xc] sm:$0xf]
        %v242 = vld [vmem:[%s1 + $0x10] sm:$0xf]
        %v243 = vld [vmem:[%s1 + $0x14] sm:$0xf]
        %v244 = vld [vmem:[%s1 + $0x18] sm:$0xf]
        %v245 = vld [vmem:[%s1 + $0x1c] sm:$0xf]
        %v246 = vld [vmem:[%s205] sm:$0xf]
        %v247 = vld [vmem:[%s205 + $0x4] sm:$0xf]
        %v248 = vld [vmem:[%s205 + $0x8] sm:$0xf]
        %v249 = vld [vmem:[%s205 + $0xc] sm:$0xf]
        %v258 = vunpack.c.l.b16 %v238
        %v259 = vunpack.c.l.b16 %v239
        %v260 = vunpack.c.l.b16 %v240
        %v261 = vunpack.c.l.b16 %v241
        %v262 = vunpack.c.l.b16 %v242
        %v263 = vunpack.c.l.b16 %v243
        %v264 = vunpack.c.l.b16 %v244
        %v265 = vunpack.c.l.b16 %v245
        %v266 = vpack.c.b16 %v259, %v258
        %v267 = vpack.c.b16 %v261, %v260
        %v268 = vpack.c.b16 %v263, %v262
        %v269 = vpack.c.b16 %v265, %v264
        %v274 = vunpack.c.l.b16 %v246
        %v275 = vunpack.c.l.b16 %v247
        %v276 = vunpack.c.l.b16 %v248
        %v277 = vunpack.c.l.b16 %v249
        %v278 = vpack.c.b16 %v275, %v274
        %v279 = vpack.c.b16 %v277, %v276
        %vm282 = vcmask 261120
        %v284 = vsel %vm282, %v266, 0
        %v287 = vsel %vm282, %v267, 0
        %v290 = vsel %vm282, %v268, 0
        %v293 = vsel %vm282, %v269, 0
        %295 = vmatpush.bf16.msra.mxu0 0
        %296 = vmatpush.bf16.msra.mxu0 0
        %297 = vmatpush.bf16.msra.mxu0 0
        %298 = vmatpush.bf16.msra.mxu0 0
        %299 = vmatpush.bf16.msra.mxu0 0
        %300 = vmatpush.bf16.msra.mxu0 0
        %301 = vmatpush.bf16.msra.mxu0 %v279
        %302 = vmatpush.bf16.msra.mxu0 %v278
        %303 = vmatmul.bf16.gmra.mxu0 %v284
        %v304 = vpop.f32.mrf.mxu0
        %v305 = vadd.f32 0.0, %v304
        %v306 = vpop.f32.mrf.mxu0
        %v307 = vadd.f32 0.0, %v306
        %308 = vmatmul.bf16.gmra.mxu0 %v287
        %v309 = vpop.f32.mrf.mxu0
        %v310 = vadd.f32 0.0, %v309
        %v311 = vpop.f32.mrf.mxu0
        %v312 = vadd.f32 0.0, %v311
        %313 = vmatmul.bf16.gmra.mxu0 %v290
        %v314 = vpop.f32.mrf.mxu0
        %v315 = vadd.f32 0.0, %v314
        %v316 = vpop.f32.mrf.mxu0
        %v317 = vadd.f32 0.0, %v316
        %318 = vmatmul.bf16.gmra.mxu0 %v293
        %v319 = vpop.f32.mrf.mxu0
        %v320 = vadd.f32 0.0, %v319
        %v321 = vpop.f32.mrf.mxu0
        %v322 = vadd.f32 0.0, %v321
        %323 = vdwg.mxu0
        %v325 = vrot.slane %v305, 4
        %326 = vrot.lane.b32.xlu0 %v325, 64
        %v327 = vpop.permute.xlu0 %326
        %v330 = vrot.slane %v307, 4
        %331 = vrot.lane.b32.xlu0 %v330, 64
        %v332 = vpop.permute.xlu0 %331
        %v335 = vrot.slane %v310, 4
        %336 = vrot.lane.b32.xlu0 %v335, 64
        %v337 = vpop.permute.xlu0 %336
        %v340 = vrot.slane %v312, 4
        %341 = vrot.lane.b32.xlu0 %v340, 64
        %v342 = vpop.permute.xlu0 %341
        %v345 = vrot.slane %v315, 4
        %346 = vrot.lane.b32.xlu0 %v345, 64
        %v347 = vpop.permute.xlu0 %346
        %v350 = vrot.slane %v317, 4
        %351 = vrot.lane.b32.xlu0 %v350, 64
        %v352 = vpop.permute.xlu0 %351
        %v355 = vrot.slane %v320, 4
        %356 = vrot.lane.b32.xlu0 %v355, 64
        %v357 = vpop.permute.xlu0 %356
        %v360 = vrot.slane %v322, 4
        %361 = vrot.lane.b32.xlu0 %v360, 64
        %v362 = vpop.permute.xlu0 %361
        %vm364 = vcmask 523264
        %v365 = vsel %vm364, %v305, %v327
        %v366 = vsel %vm364, %v307, %v332
        %v367 = vsel %vm364, %v310, %v337
        %v368 = vsel %vm364, %v312, %v342
        %v369 = vsel %vm364, %v315, %v347
        %v370 = vsel %vm364, %v317, %v352
        %v371 = vsel %vm364, %v320, %v357
        %v372 = vsel %vm364, %v322, %v362
        %v373 = vpack.c.bf16 %v366, %v365
        %v374 = vpack.c.bf16 %v368, %v367
        %v375 = vpack.c.bf16 %v370, %v369
        %v376 = vpack.c.bf16 %v372, %v371
        %s377 = scalar_lea.vmem %s205, 16 [#allocation2]
        %v378 = vld [vmem:[%s377] sm:$0xf]
        %v379 = vld [vmem:[%s377 + $0x4] sm:$0xf]
        %v380 = vld [vmem:[%s377 + $0x8] sm:$0xf]
        %v381 = vld [vmem:[%s377 + $0xc] sm:$0xf]
        %v386 = vunpack.c.l.b16 %v378
        %v387 = vunpack.c.l.b16 %v379
        %v388 = vunpack.c.l.b16 %v380
        %v389 = vunpack.c.l.b16 %v381
        %v390 = vpack.c.b16 %v387, %v386
        %v391 = vpack.c.b16 %v389, %v388
        %394 = vmatpush.bf16.msra.mxu0 0
        %395 = vmatpush.bf16.msra.mxu0 0
        %396 = vmatpush.bf16.msra.mxu0 0
        %397 = vmatpush.bf16.msra.mxu0 0
        %398 = vmatpush.bf16.msra.mxu0 0
        %399 = vmatpush.bf16.msra.mxu0 0
        %400 = vmatpush.bf16.msra.mxu0 %v391
        %401 = vmatpush.bf16.msra.mxu0 %v390
        %402 = vmatmul.bf16.gmra.mxu0 %v284
        %v403 = vpop.f32.mrf.mxu0
        %v404 = vadd.f32 0.0, %v403
        %v405 = vpop.f32.mrf.mxu0
        %v406 = vadd.f32 0.0, %v405
        %407 = vmatmul.bf16.gmra.mxu0 %v287
        %v408 = vpop.f32.mrf.mxu0
        %v409 = vadd.f32 0.0, %v408
        %v410 = vpop.f32.mrf.mxu0
        %v411 = vadd.f32 0.0, %v410
        %412 = vmatmul.bf16.gmra.mxu0 %v290
        %v413 = vpop.f32.mrf.mxu0
        %v414 = vadd.f32 0.0, %v413
        %v415 = vpop.f32.mrf.mxu0
        %v416 = vadd.f32 0.0, %v415
        %417 = vmatmul.bf16.gmra.mxu0 %v293
        %v418 = vpop.f32.mrf.mxu0
        %v419 = vadd.f32 0.0, %v418
        %v420 = vpop.f32.mrf.mxu0
        %v421 = vadd.f32 0.0, %v420
        %422 = vdwg.mxu0
        %v424 = vrot.slane %v404, 4
        %425 = vrot.lane.b32.xlu0 %v424, 64
        %v426 = vpop.permute.xlu0 %425
        %v429 = vrot.slane %v406, 4
        %430 = vrot.lane.b32.xlu0 %v429, 64
        %v431 = vpop.permute.xlu0 %430
        %v434 = vrot.slane %v409, 4
        %435 = vrot.lane.b32.xlu0 %v434, 64
        %v436 = vpop.permute.xlu0 %435
        %v439 = vrot.slane %v411, 4
        %440 = vrot.lane.b32.xlu0 %v439, 64
        %v441 = vpop.permute.xlu0 %440
        %v444 = vrot.slane %v414, 4
        %445 = vrot.lane.b32.xlu0 %v444, 64
        %v446 = vpop.permute.xlu0 %445
        %v449 = vrot.slane %v416, 4
        %450 = vrot.lane.b32.xlu0 %v449, 64
        %v451 = vpop.permute.xlu0 %450
        %v454 = vrot.slane %v419, 4
        %455 = vrot.lane.b32.xlu0 %v454, 64
        %v456 = vpop.permute.xlu0 %455
        %v459 = vrot.slane %v421, 4
        %460 = vrot.lane.b32.xlu0 %v459, 64
        %v461 = vpop.permute.xlu0 %460
        %v463 = vsel %vm364, %v404, %v426
        %v464 = vsel %vm364, %v406, %v431
        %v465 = vsel %vm364, %v409, %v436
        %v466 = vsel %vm364, %v411, %v441
        %v467 = vsel %vm364, %v414, %v446
        %v468 = vsel %vm364, %v416, %v451
        %v469 = vsel %vm364, %v419, %v456
        %v470 = vsel %vm364, %v421, %v461
        %v471 = vpack.c.bf16 %v464, %v463
        %v472 = vpack.c.bf16 %v466, %v465
        %v473 = vpack.c.bf16 %v468, %v467
        %v474 = vpack.c.bf16 %v470, %v469
        %v479 = vunpack.c.l.b16 %v373
        %v480 = vunpack.c.h.b16 %v373
        %v481 = vunpack.c.l.b16 %v374
        %v482 = vunpack.c.h.b16 %v374
        %v483 = vunpack.c.l.b16 %v375
        %v484 = vunpack.c.h.b16 %v375
        %v485 = vunpack.c.l.b16 %v376
        %v486 = vunpack.c.h.b16 %v376
        %v487 = vpack.c.b16 %v479, %v479
        %v488 = vpack.c.b16 %v480, %v480
        %v489 = vpack.c.b16 %v481, %v481
        %v490 = vpack.c.b16 %v482, %v482
        %v491 = vpack.c.b16 %v483, %v483
        %v492 = vpack.c.b16 %v484, %v484
        %v493 = vpack.c.b16 %v485, %v485
        %v494 = vpack.c.b16 %v486, %v486
        %v499 = vunpack.c.l.b16 %v471
        %v500 = vunpack.c.h.b16 %v471
        %v501 = vunpack.c.l.b16 %v472
        %v502 = vunpack.c.h.b16 %v472
        %v503 = vunpack.c.l.b16 %v473
        %v504 = vunpack.c.h.b16 %v473
        %v505 = vunpack.c.l.b16 %v474
        %v506 = vunpack.c.h.b16 %v474
        %v507 = vpack.c.b16 %v499, %v499
        %v508 = vpack.c.b16 %v500, %v500
        %v509 = vpack.c.b16 %v501, %v501
        %v510 = vpack.c.b16 %v502, %v502
        %v511 = vpack.c.b16 %v503, %v503
        %v512 = vpack.c.b16 %v504, %v504
        %v513 = vpack.c.b16 %v505, %v505
        %v514 = vpack.c.b16 %v506, %v506
        %v515 = vrot.slane %v507, 6
        %v516 = vrot.slane %v508, 6
        %v517 = vrot.slane %v509, 6
        %v518 = vrot.slane %v510, 6
        %v519 = vrot.slane %v511, 6
        %v520 = vrot.slane %v512, 6
        %v521 = vrot.slane %v513, 6
        %v522 = vrot.slane %v514, 6
        %vm523 = vcmask 1041408
        %v526 = vsel %vm523, %v487, %v515
        %v530 = vsel %vm523, %v488, %v516
        %v534 = vsel %vm523, %v489, %v517
        %v538 = vsel %vm523, %v490, %v518
        %v542 = vsel %vm523, %v491, %v519
        %v546 = vsel %vm523, %v492, %v520
        %v550 = vsel %vm523, %v493, %v521
        %v554 = vsel %vm523, %v494, %v522
        %v556 = vld [vmem:[#allocation5] sm:$0xff]
        %v557 = vld [vmem:[#allocation5 + $0x8] sm:$0xff]
        %v558 = vld [vmem:[#allocation5 + $0x10] sm:$0xff]
        %v559 = vld [vmem:[#allocation5 + $0x18] sm:$0xff]
        %v560 = vld [vmem:[#allocation5 + $0x20] sm:$0xff]
        %v561 = vld [vmem:[#allocation5 + $0x28] sm:$0xff]
        %v562 = vld [vmem:[#allocation5 + $0x30] sm:$0xff]
        %v563 = vld [vmem:[#allocation5 + $0x38] sm:$0xff]
        %v564 = vld [vmem:[#allocation5 + $0x40] sm:$0xff]
        %v565 = vld [vmem:[#allocation5 + $0x48] sm:$0xff]
        %v566 = vld [vmem:[#allocation5 + $0x50] sm:$0xff]
        %v567 = vld [vmem:[#allocation5 + $0x58] sm:$0xff]
        %v568 = vld [vmem:[#allocation5 + $0x60] sm:$0xff]
        %v569 = vld [vmem:[#allocation5 + $0x68] sm:$0xff]
        %v570 = vld [vmem:[#allocation5 + $0x70] sm:$0xff]
        %v571 = vld [vmem:[#allocation5 + $0x78] sm:$0xff]
        %v572 = vld [vmem:[#allocation5 + $0x80] sm:$0xff]
        %v573 = vld [vmem:[#allocation5 + $0x88] sm:$0xff]
        %v574 = vld [vmem:[#allocation5 + $0x90] sm:$0xff]
        %v575 = vld [vmem:[#allocation5 + $0x98] sm:$0xff]
        %v576 = vld [vmem:[#allocation5 + $0xa0] sm:$0xff]
        %v577 = vld [vmem:[#allocation5 + $0xa8] sm:$0xff]
        %v578 = vld [vmem:[#allocation5 + $0xb0] sm:$0xff]
        %v579 = vld [vmem:[#allocation5 + $0xb8] sm:$0xff]
        %v580 = vld [vmem:[#allocation5 + $0xc0] sm:$0xff]
        %v581 = vld [vmem:[#allocation5 + $0xc8] sm:$0xff]
        %v582 = vld [vmem:[#allocation5 + $0xd0] sm:$0xff]
        %v583 = vld [vmem:[#allocation5 + $0xd8] sm:$0xff]
        %v584 = vld [vmem:[#allocation5 + $0xe0] sm:$0xff]
        %v585 = vld [vmem:[#allocation5 + $0xe8] sm:$0xff]
        %v586 = vld [vmem:[#allocation5 + $0xf0] sm:$0xff]
        %v587 = vld [vmem:[#allocation5 + $0xf8] sm:$0xff]
        %v588 = vld [vmem:[#allocation5 + $0x100] sm:$0xff]
        %v589 = vld [vmem:[#allocation5 + $0x108] sm:$0xff]
        %v590 = vld [vmem:[#allocation5 + $0x110] sm:$0xff]
        %v591 = vld [vmem:[#allocation5 + $0x118] sm:$0xff]
        %v592 = vld [vmem:[#allocation5 + $0x120] sm:$0xff]
        %v593 = vld [vmem:[#allocation5 + $0x128] sm:$0xff]
        %v594 = vld [vmem:[#allocation5 + $0x130] sm:$0xff]
        %v595 = vld [vmem:[#allocation5 + $0x138] sm:$0xff]
        %v596 = vld [vmem:[#allocation5 + $0x140] sm:$0xff]
        %v597 = vld [vmem:[#allocation5 + $0x148] sm:$0xff]
        %v598 = vld [vmem:[#allocation5 + $0x150] sm:$0xff]
        %v599 = vld [vmem:[#allocation5 + $0x158] sm:$0xff]
        %v600 = vld [vmem:[#allocation5 + $0x160] sm:$0xff]
        %v601 = vld [vmem:[#allocation5 + $0x168] sm:$0xff]
        %v602 = vld [vmem:[#allocation5 + $0x170] sm:$0xff]
        %v603 = vld [vmem:[#allocation5 + $0x178] sm:$0xff]
        %v604 = vld [vmem:[#allocation5 + $0x180] sm:$0xff]
        %v605 = vld [vmem:[#allocation5 + $0x188] sm:$0xff]
        %v606 = vld [vmem:[#allocation5 + $0x190] sm:$0xff]
        %v607 = vld [vmem:[#allocation5 + $0x198] sm:$0xff]
        %v608 = vld [vmem:[#allocation5 + $0x1a0] sm:$0xff]
        %v609 = vld [vmem:[#allocation5 + $0x1a8] sm:$0xff]
        %v610 = vld [vmem:[#allocation5 + $0x1b0] sm:$0xff]
        %v611 = vld [vmem:[#allocation5 + $0x1b8] sm:$0xff]
        %v612 = vld [vmem:[#allocation5 + $0x1c0] sm:$0xff]
        %v613 = vld [vmem:[#allocation5 + $0x1c8] sm:$0xff]
        %v614 = vld [vmem:[#allocation5 + $0x1d0] sm:$0xff]
        %v615 = vld [vmem:[#allocation5 + $0x1d8] sm:$0xff]
        %v616 = vld [vmem:[#allocation5 + $0x1e0] sm:$0xff]
        %v617 = vld [vmem:[#allocation5 + $0x1e8] sm:$0xff]
        %v618 = vld [vmem:[#allocation5 + $0x1f0] sm:$0xff]
        %v619 = vld [vmem:[#allocation5 + $0x1f8] sm:$0xff]
        %v620 = vld [vmem:[#allocation5 + $0x200] sm:$0xff]
        %v621 = vld [vmem:[#allocation5 + $0x208] sm:$0xff]
        %v622 = vld [vmem:[#allocation5 + $0x210] sm:$0xff]
        %v623 = vld [vmem:[#allocation5 + $0x218] sm:$0xff]
        %v624 = vld [vmem:[#allocation5 + $0x220] sm:$0xff]
        %v625 = vld [vmem:[#allocation5 + $0x228] sm:$0xff]
        %v626 = vld [vmem:[#allocation5 + $0x230] sm:$0xff]
        %v627 = vld [vmem:[#allocation5 + $0x238] sm:$0xff]
        %v628 = vld [vmem:[#allocation5 + $0x240] sm:$0xff]
        %v629 = vld [vmem:[#allocation5 + $0x248] sm:$0xff]
        %v630 = vld [vmem:[#allocation5 + $0x250] sm:$0xff]
        %v631 = vld [vmem:[#allocation5 + $0x258] sm:$0xff]
        %v632 = vld [vmem:[#allocation5 + $0x260] sm:$0xff]
        %v633 = vld [vmem:[#allocation5 + $0x268] sm:$0xff]
        %v634 = vld [vmem:[#allocation5 + $0x270] sm:$0xff]
        %v635 = vld [vmem:[#allocation5 + $0x278] sm:$0xff]
        %v636 = vld [vmem:[#allocation5 + $0x280] sm:$0xff]
        %v637 = vld [vmem:[#allocation5 + $0x288] sm:$0xff]
        %v638 = vld [vmem:[#allocation5 + $0x290] sm:$0xff]
        %v639 = vld [vmem:[#allocation5 + $0x298] sm:$0xff]
        %v640 = vld [vmem:[#allocation5 + $0x2a0] sm:$0xff]
        %v641 = vld [vmem:[#allocation5 + $0x2a8] sm:$0xff]
        %v642 = vld [vmem:[#allocation5 + $0x2b0] sm:$0xff]
        %v643 = vld [vmem:[#allocation5 + $0x2b8] sm:$0xff]
        %v644 = vld [vmem:[#allocation5 + $0x2c0] sm:$0xff]
        %v645 = vld [vmem:[#allocation5 + $0x2c8] sm:$0xff]
        %v646 = vld [vmem:[#allocation5 + $0x2d0] sm:$0xff]
        %v647 = vld [vmem:[#allocation5 + $0x2d8] sm:$0xff]
        %v648 = vld [vmem:[#allocation5 + $0x2e0] sm:$0xff]
        %v649 = vld [vmem:[#allocation5 + $0x2e8] sm:$0xff]
        %v650 = vld [vmem:[#allocation5 + $0x2f0] sm:$0xff]
        %v651 = vld [vmem:[#allocation5 + $0x2f8] sm:$0xff]
        %v652 = vld [vmem:[#allocation5 + $0x300] sm:$0xff]
        %v653 = vld [vmem:[#allocation5 + $0x308] sm:$0xff]
        %v654 = vld [vmem:[#allocation5 + $0x310] sm:$0xff]
        %v655 = vld [vmem:[#allocation5 + $0x318] sm:$0xff]
        %v656 = vld [vmem:[#allocation5 + $0x320] sm:$0xff]
        %v657 = vld [vmem:[#allocation5 + $0x328] sm:$0xff]
        %v658 = vld [vmem:[#allocation5 + $0x330] sm:$0xff]
        %v659 = vld [vmem:[#allocation5 + $0x338] sm:$0xff]
        %v660 = vld [vmem:[#allocation5 + $0x340] sm:$0xff]
        %v661 = vld [vmem:[#allocation5 + $0x348] sm:$0xff]
        %v662 = vld [vmem:[#allocation5 + $0x350] sm:$0xff]
        %v663 = vld [vmem:[#allocation5 + $0x358] sm:$0xff]
        %v664 = vld [vmem:[#allocation5 + $0x360] sm:$0xff]
        %v665 = vld [vmem:[#allocation5 + $0x368] sm:$0xff]
        %v666 = vld [vmem:[#allocation5 + $0x370] sm:$0xff]
        %v667 = vld [vmem:[#allocation5 + $0x378] sm:$0xff]
        %v668 = vld [vmem:[#allocation5 + $0x380] sm:$0xff]
        %v669 = vld [vmem:[#allocation5 + $0x388] sm:$0xff]
        %v670 = vld [vmem:[#allocation5 + $0x390] sm:$0xff]
        %v671 = vld [vmem:[#allocation5 + $0x398] sm:$0xff]
        %v672 = vld [vmem:[#allocation5 + $0x3a0] sm:$0xff]
        %v673 = vld [vmem:[#allocation5 + $0x3a8] sm:$0xff]
        %v674 = vld [vmem:[#allocation5 + $0x3b0] sm:$0xff]
        %v675 = vld [vmem:[#allocation5 + $0x3b8] sm:$0xff]
        %v676 = vld [vmem:[#allocation5 + $0x3c0] sm:$0xff]
        %v677 = vld [vmem:[#allocation5 + $0x3c8] sm:$0xff]
        %v678 = vld [vmem:[#allocation5 + $0x3d0] sm:$0xff]
        %v679 = vld [vmem:[#allocation5 + $0x3d8] sm:$0xff]
        %v680 = vld [vmem:[#allocation5 + $0x3e0] sm:$0xff]
        %v681 = vld [vmem:[#allocation5 + $0x3e8] sm:$0xff]
        %v682 = vld [vmem:[#allocation5 + $0x3f0] sm:$0xff]
        %v683 = vld [vmem:[#allocation5 + $0x3f8] sm:$0xff]
        %v684 = vld [vmem:[%s3] sm:$0xff]
        %v685 = vld [vmem:[%s3 + $0x8] sm:$0xff]
        %v814 = vunpack.c.l.b16 %v556
        %v815 = vunpack.c.h.b16 %v556
        %v816 = vunpack.c.l.b16 %v557
        %v817 = vunpack.c.h.b16 %v557
        %v818 = vunpack.c.l.b16 %v558
        %v819 = vunpack.c.h.b16 %v558
        %v820 = vunpack.c.l.b16 %v559
        %v821 = vunpack.c.h.b16 %v559
        %v822 = vunpack.c.l.b16 %v560
        %v823 = vunpack.c.h.b16 %v560
        %v824 = vunpack.c.l.b16 %v561
        %v825 = vunpack.c.h.b16 %v561
        %v826 = vunpack.c.l.b16 %v562
        %v827 = vunpack.c.h.b16 %v562
        %v828 = vunpack.c.l.b16 %v563
        %v829 = vunpack.c.h.b16 %v563
        %v830 = vunpack.c.l.b16 %v564
        %v831 = vunpack.c.h.b16 %v564
        %v832 = vunpack.c.l.b16 %v565
        %v833 = vunpack.c.h.b16 %v565
        %v834 = vunpack.c.l.b16 %v566
        %v835 = vunpack.c.h.b16 %v566
        %v836 = vunpack.c.l.b16 %v567
        %v837 = vunpack.c.h.b16 %v567
        %v838 = vunpack.c.l.b16 %v568
        %v839 = vunpack.c.h.b16 %v568
        %v840 = vunpack.c.l.b16 %v569
        %v841 = vunpack.c.h.b16 %v569
        %v842 = vunpack.c.l.b16 %v570
        %v843 = vunpack.c.h.b16 %v570
        %v844 = vunpack.c.l.b16 %v571
        %v845 = vunpack.c.h.b16 %v571
        %v846 = vunpack.c.l.b16 %v572
        %v847 = vunpack.c.h.b16 %v572
        %v848 = vunpack.c.l.b16 %v573
        %v849 = vunpack.c.h.b16 %v573
        %v850 = vunpack.c.l.b16 %v574
        %v851 = vunpack.c.h.b16 %v574
        %v852 = vunpack.c.l.b16 %v575
        %v853 = vunpack.c.h.b16 %v575
        %v854 = vunpack.c.l.b16 %v576
        %v855 = vunpack.c.h.b16 %v576
        %v856 = vunpack.c.l.b16 %v577
        %v857 = vunpack.c.h.b16 %v577
        %v858 = vunpack.c.l.b16 %v578
        %v859 = vunpack.c.h.b16 %v578
        %v860 = vunpack.c.l.b16 %v579
        %v861 = vunpack.c.h.b16 %v579
        %v862 = vunpack.c.l.b16 %v580
        %v863 = vunpack.c.h.b16 %v580
        %v864 = vunpack.c.l.b16 %v581
        %v865 = vunpack.c.h.b16 %v581
        %v866 = vunpack.c.l.b16 %v582
        %v867 = vunpack.c.h.b16 %v582
        %v868 = vunpack.c.l.b16 %v583
        %v869 = vunpack.c.h.b16 %v583
        %v870 = vunpack.c.l.b16 %v584
        %v871 = vunpack.c.h.b16 %v584
        %v872 = vunpack.c.l.b16 %v585
        %v873 = vunpack.c.h.b16 %v585
        %v874 = vunpack.c.l.b16 %v586
        %v875 = vunpack.c.h.b16 %v586
        %v876 = vunpack.c.l.b16 %v587
        %v877 = vunpack.c.h.b16 %v587
        %v878 = vunpack.c.l.b16 %v588
        %v879 = vunpack.c.h.b16 %v588
        %v880 = vunpack.c.l.b16 %v589
        %v881 = vunpack.c.h.b16 %v589
        %v882 = vunpack.c.l.b16 %v590
        %v883 = vunpack.c.h.b16 %v590
        %v884 = vunpack.c.l.b16 %v591
        %v885 = vunpack.c.h.b16 %v591
        %v886 = vunpack.c.l.b16 %v592
        %v887 = vunpack.c.h.b16 %v592
        %v888 = vunpack.c.l.b16 %v593
        %v889 = vunpack.c.h.b16 %v593
        %v890 = vunpack.c.l.b16 %v594
        %v891 = vunpack.c.h.b16 %v594
        %v892 = vunpack.c.l.b16 %v595
        %v893 = vunpack.c.h.b16 %v595
        %v894 = vunpack.c.l.b16 %v596
        %v895 = vunpack.c.h.b16 %v596
        %v896 = vunpack.c.l.b16 %v597
        %v897 = vunpack.c.h.b16 %v597
        %v898 = vunpack.c.l.b16 %v598
        %v899 = vunpack.c.h.b16 %v598
        %v900 = vunpack.c.l.b16 %v599
        %v901 = vunpack.c.h.b16 %v599
        %v902 = vunpack.c.l.b16 %v600
        %v903 = vunpack.c.h.b16 %v600
        %v904 = vunpack.c.l.b16 %v601
        %v905 = vunpack.c.h.b16 %v601
        %v906 = vunpack.c.l.b16 %v602
        %v907 = vunpack.c.h.b16 %v602
        %v908 = vunpack.c.l.b16 %v603
        %v909 = vunpack.c.h.b16 %v603
        %v910 = vunpack.c.l.b16 %v604
        %v911 = vunpack.c.h.b16 %v604
        %v912 = vunpack.c.l.b16 %v605
        %v913 = vunpack.c.h.b16 %v605
        %v914 = vunpack.c.l.b16 %v606
        %v915 = vunpack.c.h.b16 %v606
        %v916 = vunpack.c.l.b16 %v607
        %v917 = vunpack.c.h.b16 %v607
        %v918 = vunpack.c.l.b16 %v608
        %v919 = vunpack.c.h.b16 %v608
        %v920 = vunpack.c.l.b16 %v609
        %v921 = vunpack.c.h.b16 %v609
        %v922 = vunpack.c.l.b16 %v610
        %v923 = vunpack.c.h.b16 %v610
        %v924 = vunpack.c.l.b16 %v611
        %v925 = vunpack.c.h.b16 %v611
        %v926 = vunpack.c.l.b16 %v612
        %v927 = vunpack.c.h.b16 %v612
        %v928 = vunpack.c.l.b16 %v613
        %v929 = vunpack.c.h.b16 %v613
        %v930 = vunpack.c.l.b16 %v614
        %v931 = vunpack.c.h.b16 %v614
        %v932 = vunpack.c.l.b16 %v615
        %v933 = vunpack.c.h.b16 %v615
        %v934 = vunpack.c.l.b16 %v616
        %v935 = vunpack.c.h.b16 %v616
        %v936 = vunpack.c.l.b16 %v617
        %v937 = vunpack.c.h.b16 %v617
        %v938 = vunpack.c.l.b16 %v618
        %v939 = vunpack.c.h.b16 %v618
        %v940 = vunpack.c.l.b16 %v619
        %v941 = vunpack.c.h.b16 %v619
        %v942 = vunpack.c.l.b16 %v620
        %v943 = vunpack.c.h.b16 %v620
        %v944 = vunpack.c.l.b16 %v621
        %v945 = vunpack.c.h.b16 %v621
        %v946 = vunpack.c.l.b16 %v622
        %v947 = vunpack.c.h.b16 %v622
        %v948 = vunpack.c.l.b16 %v623
        %v949 = vunpack.c.h.b16 %v623
        %v950 = vunpack.c.l.b16 %v624
        %v951 = vunpack.c.h.b16 %v624
        %v952 = vunpack.c.l.b16 %v625
        %v953 = vunpack.c.h.b16 %v625
        %v954 = vunpack.c.l.b16 %v626
        %v955 = vunpack.c.h.b16 %v626
        %v956 = vunpack.c.l.b16 %v627
        %v957 = vunpack.c.h.b16 %v627
        %v958 = vunpack.c.l.b16 %v628
        %v959 = vunpack.c.h.b16 %v628
        %v960 = vunpack.c.l.b16 %v629
        %v961 = vunpack.c.h.b16 %v629
        %v962 = vunpack.c.l.b16 %v630
        %v963 = vunpack.c.h.b16 %v630
        %v964 = vunpack.c.l.b16 %v631
        %v965 = vunpack.c.h.b16 %v631
        %v966 = vunpack.c.l.b16 %v632
        %v967 = vunpack.c.h.b16 %v632
        %v968 = vunpack.c.l.b16 %v633
        %v969 = vunpack.c.h.b16 %v633
        %v970 = vunpack.c.l.b16 %v634
        %v971 = vunpack.c.h.b16 %v634
        %v972 = vunpack.c.l.b16 %v635
        %v973 = vunpack.c.h.b16 %v635
        %v974 = vunpack.c.l.b16 %v636
        %v975 = vunpack.c.h.b16 %v636
        %v976 = vunpack.c.l.b16 %v637
        %v977 = vunpack.c.h.b16 %v637
        %v978 = vunpack.c.l.b16 %v638
        %v979 = vunpack.c.h.b16 %v638
        %v980 = vunpack.c.l.b16 %v639
        %v981 = vunpack.c.h.b16 %v639
        %v982 = vunpack.c.l.b16 %v640
        %v983 = vunpack.c.h.b16 %v640
        %v984 = vunpack.c.l.b16 %v641
        %v985 = vunpack.c.h.b16 %v641
        %v986 = vunpack.c.l.b16 %v642
        %v987 = vunpack.c.h.b16 %v642
        %v988 = vunpack.c.l.b16 %v643
        %v989 = vunpack.c.h.b16 %v643
        %v990 = vunpack.c.l.b16 %v644
        %v991 = vunpack.c.h.b16 %v644
        %v992 = vunpack.c.l.b16 %v645
        %v993 = vunpack.c.h.b16 %v645
        %v994 = vunpack.c.l.b16 %v646
        %v995 = vunpack.c.h.b16 %v646
        %v996 = vunpack.c.l.b16 %v647
        %v997 = vunpack.c.h.b16 %v647
        %v998 = vunpack.c.l.b16 %v648
        %v999 = vunpack.c.h.b16 %v648
        %v1000 = vunpack.c.l.b16 %v649
        %v1001 = vunpack.c.h.b16 %v649
        %v1002 = vunpack.c.l.b16 %v650
        %v1003 = vunpack.c.h.b16 %v650
        %v1004 = vunpack.c.l.b16 %v651
        %v1005 = vunpack.c.h.b16 %v651
        %v1006 = vunpack.c.l.b16 %v652
        %v1007 = vunpack.c.h.b16 %v652
        %v1008 = vunpack.c.l.b16 %v653
        %v1009 = vunpack.c.h.b16 %v653
        %v1010 = vunpack.c.l.b16 %v654
        %v1011 = vunpack.c.h.b16 %v654
        %v1012 = vunpack.c.l.b16 %v655
        %v1013 = vunpack.c.h.b16 %v655
        %v1014 = vunpack.c.l.b16 %v656
        %v1015 = vunpack.c.h.b16 %v656
        %v1016 = vunpack.c.l.b16 %v657
        %v1017 = vunpack.c.h.b16 %v657
        %v1018 = vunpack.c.l.b16 %v658
        %v1019 = vunpack.c.h.b16 %v658
        %v1020 = vunpack.c.l.b16 %v659
        %v1021 = vunpack.c.h.b16 %v659
        %v1022 = vunpack.c.l.b16 %v660
        %v1023 = vunpack.c.h.b16 %v660
        %v1024 = vunpack.c.l.b16 %v661
        %v1025 = vunpack.c.h.b16 %v661
        %v1026 = vunpack.c.l.b16 %v662
        %v1027 = vunpack.c.h.b16 %v662
        %v1028 = vunpack.c.l.b16 %v663
        %v1029 = vunpack.c.h.b16 %v663
        %v1030 = vunpack.c.l.b16 %v664
        %v1031 = vunpack.c.h.b16 %v664
        %v1032 = vunpack.c.l.b16 %v665
        %v1033 = vunpack.c.h.b16 %v665
        %v1034 = vunpack.c.l.b16 %v666
        %v1035 = vunpack.c.h.b16 %v666
        %v1036 = vunpack.c.l.b16 %v667
        %v1037 = vunpack.c.h.b16 %v667
        %v1038 = vunpack.c.l.b16 %v668
        %v1039 = vunpack.c.h.b16 %v668
        %v1040 = vunpack.c.l.b16 %v669
        %v1041 = vunpack.c.h.b16 %v669
        %v1042 = vunpack.c.l.b16 %v670
        %v1043 = vunpack.c.h.b16 %v670
        %v1044 = vunpack.c.l.b16 %v671
        %v1045 = vunpack.c.h.b16 %v671
        %v1046 = vunpack.c.l.b16 %v672
        %v1047 = vunpack.c.h.b16 %v672
        %v1048 = vunpack.c.l.b16 %v673
        %v1049 = vunpack.c.h.b16 %v673
        %v1050 = vunpack.c.l.b16 %v674
        %v1051 = vunpack.c.h.b16 %v674
        %v1052 = vunpack.c.l.b16 %v675
        %v1053 = vunpack.c.h.b16 %v675
        %v1054 = vunpack.c.l.b16 %v676
        %v1055 = vunpack.c.h.b16 %v676
        %v1056 = vunpack.c.l.b16 %v677
        %v1057 = vunpack.c.h.b16 %v677
        %v1058 = vunpack.c.l.b16 %v678
        %v1059 = vunpack.c.h.b16 %v678
        %v1060 = vunpack.c.l.b16 %v679
        %v1061 = vunpack.c.h.b16 %v679
        %v1062 = vunpack.c.l.b16 %v680
        %v1063 = vunpack.c.h.b16 %v680
        %v1064 = vunpack.c.l.b16 %v681
        %v1065 = vunpack.c.h.b16 %v681
        %v1066 = vunpack.c.l.b16 %v682
        %v1067 = vunpack.c.h.b16 %v682
        %v1068 = vunpack.c.l.b16 %v683
        %v1069 = vunpack.c.h.b16 %v683
        %v1070 = vpack.c.b16 %v816, %v814
        %v1071 = vpack.c.b16 %v817, %v815
        %v1072 = vpack.c.b16 %v820, %v818
        %v1073 = vpack.c.b16 %v821, %v819
        %v1074 = vpack.c.b16 %v824, %v822
        %v1075 = vpack.c.b16 %v825, %v823
        %v1076 = vpack.c.b16 %v828, %v826
        %v1077 = vpack.c.b16 %v829, %v827
        %v1078 = vpack.c.b16 %v832, %v830
        %v1079 = vpack.c.b16 %v833, %v831
        %v1080 = vpack.c.b16 %v836, %v834
        %v1081 = vpack.c.b16 %v837, %v835
        %v1082 = vpack.c.b16 %v840, %v838
        %v1083 = vpack.c.b16 %v841, %v839
        %v1084 = vpack.c.b16 %v844, %v842
        %v1085 = vpack.c.b16 %v845, %v843
        %v1086 = vpack.c.b16 %v848, %v846
        %v1087 = vpack.c.b16 %v849, %v847
        %v1088 = vpack.c.b16 %v852, %v850
        %v1089 = vpack.c.b16 %v853, %v851
        %v1090 = vpack.c.b16 %v856, %v854
        %v1091 = vpack.c.b16 %v857, %v855
        %v1092 = vpack.c.b16 %v860, %v858
        %v1093 = vpack.c.b16 %v861, %v859
        %v1094 = vpack.c.b16 %v864, %v862
        %v1095 = vpack.c.b16 %v865, %v863
        %v1096 = vpack.c.b16 %v868, %v866
        %v1097 = vpack.c.b16 %v869, %v867
        %v1098 = vpack.c.b16 %v872, %v870
        %v1099 = vpack.c.b16 %v873, %v871
        %v1100 = vpack.c.b16 %v876, %v874
        %v1101 = vpack.c.b16 %v877, %v875
        %v1102 = vpack.c.b16 %v880, %v878
        %v1103 = vpack.c.b16 %v881, %v879
        %v1104 = vpack.c.b16 %v884, %v882
        %v1105 = vpack.c.b16 %v885, %v883
        %v1106 = vpack.c.b16 %v888, %v886
        %v1107 = vpack.c.b16 %v889, %v887
        %v1108 = vpack.c.b16 %v892, %v890
        %v1109 = vpack.c.b16 %v893, %v891
        %v1110 = vpack.c.b16 %v896, %v894
        %v1111 = vpack.c.b16 %v897, %v895
        %v1112 = vpack.c.b16 %v900, %v898
        %v1113 = vpack.c.b16 %v901, %v899
        %v1114 = vpack.c.b16 %v904, %v902
        %v1115 = vpack.c.b16 %v905, %v903
        %v1116 = vpack.c.b16 %v908, %v906
        %v1117 = vpack.c.b16 %v909, %v907
        %v1118 = vpack.c.b16 %v912, %v910
        %v1119 = vpack.c.b16 %v913, %v911
        %v1120 = vpack.c.b16 %v916, %v914
        %v1121 = vpack.c.b16 %v917, %v915
        %v1122 = vpack.c.b16 %v920, %v918
        %v1123 = vpack.c.b16 %v921, %v919
        %v1124 = vpack.c.b16 %v924, %v922
        %v1125 = vpack.c.b16 %v925, %v923
        %v1126 = vpack.c.b16 %v928, %v926
        %v1127 = vpack.c.b16 %v929, %v927
        %v1128 = vpack.c.b16 %v932, %v930
        %v1129 = vpack.c.b16 %v933, %v931
        %v1130 = vpack.c.b16 %v936, %v934
        %v1131 = vpack.c.b16 %v937, %v935
        %v1132 = vpack.c.b16 %v940, %v938
        %v1133 = vpack.c.b16 %v941, %v939
        %v1134 = vpack.c.b16 %v944, %v942
        %v1135 = vpack.c.b16 %v945, %v943
        %v1136 = vpack.c.b16 %v948, %v946
        %v1137 = vpack.c.b16 %v949, %v947
        %v1138 = vpack.c.b16 %v952, %v950
        %v1139 = vpack.c.b16 %v953, %v951
        %v1140 = vpack.c.b16 %v956, %v954
        %v1141 = vpack.c.b16 %v957, %v955
        %v1142 = vpack.c.b16 %v960, %v958
        %v1143 = vpack.c.b16 %v961, %v959
        %v1144 = vpack.c.b16 %v964, %v962
        %v1145 = vpack.c.b16 %v965, %v963
        %v1146 = vpack.c.b16 %v968, %v966
        %v1147 = vpack.c.b16 %v969, %v967
        %v1148 = vpack.c.b16 %v972, %v970
        %v1149 = vpack.c.b16 %v973, %v971
        %v1150 = vpack.c.b16 %v976, %v974
        %v1151 = vpack.c.b16 %v977, %v975
        %v1152 = vpack.c.b16 %v980, %v978
        %v1153 = vpack.c.b16 %v981, %v979
        %v1154 = vpack.c.b16 %v984, %v982
        %v1155 = vpack.c.b16 %v985, %v983
        %v1156 = vpack.c.b16 %v988, %v986
        %v1157 = vpack.c.b16 %v989, %v987
        %v1158 = vpack.c.b16 %v992, %v990
        %v1159 = vpack.c.b16 %v993, %v991
        %v1160 = vpack.c.b16 %v996, %v994
        %v1161 = vpack.c.b16 %v997, %v995
        %v1162 = vpack.c.b16 %v1000, %v998
        %v1163 = vpack.c.b16 %v1001, %v999
        %v1164 = vpack.c.b16 %v1004, %v1002
        %v1165 = vpack.c.b16 %v1005, %v1003
        %v1166 = vpack.c.b16 %v1008, %v1006
        %v1167 = vpack.c.b16 %v1009, %v1007
        %v1168 = vpack.c.b16 %v1012, %v1010
        %v1169 = vpack.c.b16 %v1013, %v1011
        %v1170 = vpack.c.b16 %v1016, %v1014
        %v1171 = vpack.c.b16 %v1017, %v1015
        %v1172 = vpack.c.b16 %v1020, %v1018
        %v1173 = vpack.c.b16 %v1021, %v1019
        %v1174 = vpack.c.b16 %v1024, %v1022
        %v1175 = vpack.c.b16 %v1025, %v1023
        %v1176 = vpack.c.b16 %v1028, %v1026
        %v1177 = vpack.c.b16 %v1029, %v1027
        %v1178 = vpack.c.b16 %v1032, %v1030
        %v1179 = vpack.c.b16 %v1033, %v1031
        %v1180 = vpack.c.b16 %v1036, %v1034
        %v1181 = vpack.c.b16 %v1037, %v1035
        %v1182 = vpack.c.b16 %v1040, %v1038
        %v1183 = vpack.c.b16 %v1041, %v1039
        %v1184 = vpack.c.b16 %v1044, %v1042
        %v1185 = vpack.c.b16 %v1045, %v1043
        %v1186 = vpack.c.b16 %v1048, %v1046
        %v1187 = vpack.c.b16 %v1049, %v1047
        %v1188 = vpack.c.b16 %v1052, %v1050
        %v1189 = vpack.c.b16 %v1053, %v1051
        %v1190 = vpack.c.b16 %v1056, %v1054
        %v1191 = vpack.c.b16 %v1057, %v1055
        %v1192 = vpack.c.b16 %v1060, %v1058
        %v1193 = vpack.c.b16 %v1061, %v1059
        %v1194 = vpack.c.b16 %v1064, %v1062
        %v1195 = vpack.c.b16 %v1065, %v1063
        %v1196 = vpack.c.b16 %v1068, %v1066
        %v1197 = vpack.c.b16 %v1069, %v1067
        %1326 = vmatpush.bf16.msra.mxu0 %v1084
        %1327 = vmatpush.bf16.msra.mxu0 %v1082
        %1328 = vmatpush.bf16.msra.mxu0 %v1080
        %1329 = vmatpush.bf16.msra.mxu0 %v1078
        %1330 = vmatpush.bf16.msra.mxu0 %v1076
        %1331 = vmatpush.bf16.msra.mxu0 %v1074
        %1332 = vmatpush.bf16.msra.mxu0 %v1072
        %1333 = vmatpush.bf16.msra.mxu0 %v1070
        %1334 = vmatmul.bf16.gmra.mxu0 %v526
        %v1335 = vpop.f32.mrf.mxu0
        %v1336 = vadd.f32 %v684, %v1335
        %v1337 = vpop.f32.mrf.mxu0
        %1338 = vdwg.mxu0
        %1339 = vmatpush.bf16.msra.mxu0 %v1100
        %1340 = vmatpush.bf16.msra.mxu0 %v1098
        %1341 = vmatpush.bf16.msra.mxu0 %v1096
        %1342 = vmatpush.bf16.msra.mxu0 %v1094
        %1343 = vmatpush.bf16.msra.mxu0 %v1092
        %1344 = vmatpush.bf16.msra.mxu0 %v1090
        %1345 = vmatpush.bf16.msra.mxu0 %v1088
        %1346 = vmatpush.bf16.msra.mxu0 %v1086
        %1347 = vmatmul.bf16.gmra.mxu0 %v530
        %v1348 = vpop.f32.mrf.mxu0
        %v1349 = vadd.f32 %v1336, %v1348
        %v1350 = vpop.f32.mrf.mxu0
        %1351 = vdwg.mxu0
        %1352 = vmatpush.bf16.msra.mxu0 %v1116
        %1353 = vmatpush.bf16.msra.mxu0 %v1114
        %1354 = vmatpush.bf16.msra.mxu0 %v1112
        %1355 = vmatpush.bf16.msra.mxu0 %v1110
        %1356 = vmatpush.bf16.msra.mxu0 %v1108
        %1357 = vmatpush.bf16.msra.mxu0 %v1106
        %1358 = vmatpush.bf16.msra.mxu0 %v1104
        %1359 = vmatpush.bf16.msra.mxu0 %v1102
        %1360 = vmatmul.bf16.gmra.mxu0 %v534
        %v1361 = vpop.f32.mrf.mxu0
        %v1362 = vadd.f32 %v1349, %v1361
        %v1363 = vpop.f32.mrf.mxu0
        %1364 = vdwg.mxu0
        %1365 = vmatpush.bf16.msra.mxu0 %v1132
        %1366 = vmatpush.bf16.msra.mxu0 %v1130
        %1367 = vmatpush.bf16.msra.mxu0 %v1128
        %1368 = vmatpush.bf16.msra.mxu0 %v1126
        %1369 = vmatpush.bf16.msra.mxu0 %v1124
        %1370 = vmatpush.bf16.msra.mxu0 %v1122
        %1371 = vmatpush.bf16.msra.mxu0 %v1120
        %1372 = vmatpush.bf16.msra.mxu0 %v1118
        %1373 = vmatmul.bf16.gmra.mxu0 %v538
        %v1374 = vpop.f32.mrf.mxu0
        %v1375 = vadd.f32 %v1362, %v1374
        %v1376 = vpop.f32.mrf.mxu0
        %1377 = vdwg.mxu0
        %1378 = vmatpush.bf16.msra.mxu0 %v1148
        %1379 = vmatpush.bf16.msra.mxu0 %v1146
        %1380 = vmatpush.bf16.msra.mxu0 %v1144
        %1381 = vmatpush.bf16.msra.mxu0 %v1142
        %1382 = vmatpush.bf16.msra.mxu0 %v1140
        %1383 = vmatpush.bf16.msra.mxu0 %v1138
        %1384 = vmatpush.bf16.msra.mxu0 %v1136
        %1385 = vmatpush.bf16.msra.mxu0 %v1134
        %1386 = vmatmul.bf16.gmra.mxu0 %v542
        %v1387 = vpop.f32.mrf.mxu0
        %v1388 = vadd.f32 %v1375, %v1387
        %v1389 = vpop.f32.mrf.mxu0
        %1390 = vdwg.mxu0
        %1391 = vmatpush.bf16.msra.mxu0 %v1164
        %1392 = vmatpush.bf16.msra.mxu0 %v1162
        %1393 = vmatpush.bf16.msra.mxu0 %v1160
        %1394 = vmatpush.bf16.msra.mxu0 %v1158
        %1395 = vmatpush.bf16.msra.mxu0 %v1156
        %1396 = vmatpush.bf16.msra.mxu0 %v1154
        %1397 = vmatpush.bf16.msra.mxu0 %v1152
        %1398 = vmatpush.bf16.msra.mxu0 %v1150
        %1399 = vmatmul.bf16.gmra.mxu0 %v546
        %v1400 = vpop.f32.mrf.mxu0
        %v1401 = vadd.f32 %v1388, %v1400
        %v1402 = vpop.f32.mrf.mxu0
        %1403 = vdwg.mxu0
        %1404 = vmatpush.bf16.msra.mxu0 %v1180
        %1405 = vmatpush.bf16.msra.mxu0 %v1178
        %1406 = vmatpush.bf16.msra.mxu0 %v1176
        %1407 = vmatpush.bf16.msra.mxu0 %v1174
        %1408 = vmatpush.bf16.msra.mxu0 %v1172
        %1409 = vmatpush.bf16.msra.mxu0 %v1170
        %1410 = vmatpush.bf16.msra.mxu0 %v1168
        %1411 = vmatpush.bf16.msra.mxu0 %v1166
        %1412 = vmatmul.bf16.gmra.mxu0 %v550
        %v1413 = vpop.f32.mrf.mxu0
        %v1414 = vadd.f32 %v1401, %v1413
        %v1415 = vpop.f32.mrf.mxu0
        %1416 = vdwg.mxu0
        %1417 = vmatpush.bf16.msra.mxu0 %v1196
        %1418 = vmatpush.bf16.msra.mxu0 %v1194
        %1419 = vmatpush.bf16.msra.mxu0 %v1192
        %1420 = vmatpush.bf16.msra.mxu0 %v1190
        %1421 = vmatpush.bf16.msra.mxu0 %v1188
        %1422 = vmatpush.bf16.msra.mxu0 %v1186
        %1423 = vmatpush.bf16.msra.mxu0 %v1184
        %1424 = vmatpush.bf16.msra.mxu0 %v1182
        %1425 = vmatmul.bf16.gmra.mxu0 %v554
        %v1426 = vpop.f32.mrf.mxu0
        %v1427 = vadd.f32 %v1414, %v1426
        %v1428 = vpop.f32.mrf.mxu0
        %1429 = vdwg.mxu0
        %1430 = vmatpush.bf16.msra.mxu0 %v1085
        %1431 = vmatpush.bf16.msra.mxu0 %v1083
        %1432 = vmatpush.bf16.msra.mxu0 %v1081
        %1433 = vmatpush.bf16.msra.mxu0 %v1079
        %1434 = vmatpush.bf16.msra.mxu0 %v1077
        %1435 = vmatpush.bf16.msra.mxu0 %v1075
        %1436 = vmatpush.bf16.msra.mxu0 %v1073
        %1437 = vmatpush.bf16.msra.mxu0 %v1071
        %1438 = vmatmul.bf16.gmra.mxu0 %v526
        %v1439 = vpop.f32.mrf.mxu0
        %v1440 = vadd.f32 %v685, %v1439
        %v1441 = vpop.f32.mrf.mxu0
        %1442 = vdwg.mxu0
        %1443 = vmatpush.bf16.msra.mxu0 %v1101
        %1444 = vmatpush.bf16.msra.mxu0 %v1099
        %1445 = vmatpush.bf16.msra.mxu0 %v1097
        %1446 = vmatpush.bf16.msra.mxu0 %v1095
        %1447 = vmatpush.bf16.msra.mxu0 %v1093
        %1448 = vmatpush.bf16.msra.mxu0 %v1091
        %1449 = vmatpush.bf16.msra.mxu0 %v1089
        %1450 = vmatpush.bf16.msra.mxu0 %v1087
        %1451 = vmatmul.bf16.gmra.mxu0 %v530
        %v1452 = vpop.f32.mrf.mxu0
        %v1453 = vadd.f32 %v1440, %v1452
        %v1454 = vpop.f32.mrf.mxu0
        %1455 = vdwg.mxu0
        %1456 = vmatpush.bf16.msra.mxu0 %v1117
        %1457 = vmatpush.bf16.msra.mxu0 %v1115
        %1458 = vmatpush.bf16.msra.mxu0 %v1113
        %1459 = vmatpush.bf16.msra.mxu0 %v1111
        %1460 = vmatpush.bf16.msra.mxu0 %v1109
        %1461 = vmatpush.bf16.msra.mxu0 %v1107
        %1462 = vmatpush.bf16.msra.mxu0 %v1105
        %1463 = vmatpush.bf16.msra.mxu0 %v1103
        %1464 = vmatmul.bf16.gmra.mxu0 %v534
        %v1465 = vpop.f32.mrf.mxu0
        %v1466 = vadd.f32 %v1453, %v1465
        %v1467 = vpop.f32.mrf.mxu0
        %1468 = vdwg.mxu0
        %1469 = vmatpush.bf16.msra.mxu0 %v1133
        %1470 = vmatpush.bf16.msra.mxu0 %v1131
        %1471 = vmatpush.bf16.msra.mxu0 %v1129
        %1472 = vmatpush.bf16.msra.mxu0 %v1127
        %1473 = vmatpush.bf16.msra.mxu0 %v1125
        %1474 = vmatpush.bf16.msra.mxu0 %v1123
        %1475 = vmatpush.bf16.msra.mxu0 %v1121
        %1476 = vmatpush.bf16.msra.mxu0 %v1119
        %1477 = vmatmul.bf16.gmra.mxu0 %v538
        %v1478 = vpop.f32.mrf.mxu0
        %v1479 = vadd.f32 %v1466, %v1478
        %v1480 = vpop.f32.mrf.mxu0
        %1481 = vdwg.mxu0
        %1482 = vmatpush.bf16.msra.mxu0 %v1149
        %1483 = vmatpush.bf16.msra.mxu0 %v1147
        %1484 = vmatpush.bf16.msra.mxu0 %v1145
        %1485 = vmatpush.bf16.msra.mxu0 %v1143
        %1486 = vmatpush.bf16.msra.mxu0 %v1141
        %1487 = vmatpush.bf16.msra.mxu0 %v1139
        %1488 = vmatpush.bf16.msra.mxu0 %v1137
        %1489 = vmatpush.bf16.msra.mxu0 %v1135
        %1490 = vmatmul.bf16.gmra.mxu0 %v542
        %v1491 = vpop.f32.mrf.mxu0
        %v1492 = vadd.f32 %v1479, %v1491
        %v1493 = vpop.f32.mrf.mxu0
        %1494 = vdwg.mxu0
        %1495 = vmatpush.bf16.msra.mxu0 %v1165
        %1496 = vmatpush.bf16.msra.mxu0 %v1163
        %1497 = vmatpush.bf16.msra.mxu0 %v1161
        %1498 = vmatpush.bf16.msra.mxu0 %v1159
        %1499 = vmatpush.bf16.msra.mxu0 %v1157
        %1500 = vmatpush.bf16.msra.mxu0 %v1155
        %1501 = vmatpush.bf16.msra.mxu0 %v1153
        %1502 = vmatpush.bf16.msra.mxu0 %v1151
        %1503 = vmatmul.bf16.gmra.mxu0 %v546
        %v1504 = vpop.f32.mrf.mxu0
        %v1505 = vadd.f32 %v1492, %v1504
        %v1506 = vpop.f32.mrf.mxu0
        %1507 = vdwg.mxu0
        %1508 = vmatpush.bf16.msra.mxu0 %v1181
        %1509 = vmatpush.bf16.msra.mxu0 %v1179
        %1510 = vmatpush.bf16.msra.mxu0 %v1177
        %1511 = vmatpush.bf16.msra.mxu0 %v1175
        %1512 = vmatpush.bf16.msra.mxu0 %v1173
        %1513 = vmatpush.bf16.msra.mxu0 %v1171
        %1514 = vmatpush.bf16.msra.mxu0 %v1169
        %1515 = vmatpush.bf16.msra.mxu0 %v1167
        %1516 = vmatmul.bf16.gmra.mxu0 %v550
        %v1517 = vpop.f32.mrf.mxu0
        %v1518 = vadd.f32 %v1505, %v1517
        %v1519 = vpop.f32.mrf.mxu0
        %1520 = vdwg.mxu0
        %1521 = vmatpush.bf16.msra.mxu0 %v1197
        %1522 = vmatpush.bf16.msra.mxu0 %v1195
        %1523 = vmatpush.bf16.msra.mxu0 %v1193
        %1524 = vmatpush.bf16.msra.mxu0 %v1191
        %1525 = vmatpush.bf16.msra.mxu0 %v1189
        %1526 = vmatpush.bf16.msra.mxu0 %v1187
        %1527 = vmatpush.bf16.msra.mxu0 %v1185
        %1528 = vmatpush.bf16.msra.mxu0 %v1183
        %1529 = vmatmul.bf16.gmra.mxu0 %v554
        %v1530 = vpop.f32.mrf.mxu0
        %v1531 = vadd.f32 %v1518, %v1530
        %v1532 = vpop.f32.mrf.mxu0
        %1533 = vdwg.mxu0
        %1534 = vst [vmem:[%s235] sm:$0xff] %v1427
        %1535 = vst [vmem:[%s235 + $0x8] sm:$0xff] %v1531
        %s1536 = sand.u32 %s119, 1
        %s1537 = scalar_lea.sflag [#allocation4], %s1536
        %s1538 = sand.u32 %s119, 1
        %s1539 = smul.addr %s1538, 16
        %s1540 = scalar_lea.vmem [#allocation7], %s1539
        // Predicated region
        $region45: #{tpu_custom_call.1} parent=35 // pred_check
          %p1541 = pneg %p129
        $region46: #{tpu_custom_call.1} parent=35 // pred_check_branch
          %1543 = sbr.rel (%p1541) target = $region48
        $region47: #{tpu_custom_call.1} parent=35 // pred_region
          %1545 = vsyncadd %s1537, 0
          %s1546 = smul.addr %s22, 2
          %s1547 = smul.addr %s1546, 8
          %s1548 = scalar_lea.hbm %s4, %s1547
          %s1550 = sshll.u32 %s1540, 4
          %s1551 = int_to_ptr.vmem [resolvable:$true] %s1550
          %s1552 = sshll.u32 %s1548, 4
          %s1553 = int_to_ptr.hbm [resolvable:$true] %s1552
          %1555 = dma.vmem_to_hbm [thread:$0]  %s1551, 256, %s1553, %s1537
        $region48: #{tpu_custom_call.1} parent=35 // pred_fallthru
          _
      $region36: #{tpu_custom_call.1} parent=5 // pred_fallthru
        _
      %p1556 = scmp.le.s32.totalorder 2, %s17
      // Predicated region
      $region49: #{tpu_custom_call.1} parent=5 // pred_check
        %p1557 = pneg %p1556
      $region50: #{tpu_custom_call.1} parent=5 // pred_check_branch
        %1559 = sbr.rel (%p1557) target = $region52
      $region51: #{tpu_custom_call.1} parent=5 // pred_region
        %s1560 = ssub.s32 %s17, 2
        // Predicated region
        $region53: #{tpu_custom_call.1} parent=51 // pred_check
          %p1561 = pneg %p135
        $region54: #{tpu_custom_call.1} parent=51 // pred_check_branch
          %1563 = sbr.rel (%p1561) target = $region56
        $region55: #{tpu_custom_call.1} parent=51 // pred_region
          %s1564 = sand.u32 %s120, 1
          %s1565 = scalar_lea.sflag [#allocation4], %s1564
          %s1566 = sand.u32 %s120, 1
          %s1567 = smul.addr %s1566, 16
          %s1568 = scalar_lea.vmem [#allocation7], %s1567
          %1570 = dma.done %s1565, 256
        $region56: #{tpu_custom_call.1} parent=51 // pred_fallthru
          _
      $region52: #{tpu_custom_call.1} parent=5 // pred_fallthru
        _
    $region6: #{tpu_custom_call.1} parent=1 // loop_footer
      %s21 = sadd.s32 1, %s17
    $region7: #{tpu_custom_call.1} parent=1 // loop_footer_branch
      %16 = sbr.rel target = $region3
    $region8: #{tpu_custom_call.1} parent=1 // loop_exit
      _
    %1571 = vsyncpa [#allocation3], 1
    %s1572 = scalar_lea.sflag [#allocation3], 1
    %1573 = vsyncpa %s1572, 1
    %1574 = vsyncpa [#allocation6], 1
    %1575 = vsyncpa [#allocation4], 1
    %s1576 = scalar_lea.sflag [#allocation4], 1
    %1577 = vsyncpa %s1576, 1

</llo_original>
